<compile_context>
chip_gen: v7x
topology: tpu7x:2x2x1
jax: 0.10.0
libtpu: 0.0.40
codegen_flags: <defaults>
</compile_context>

<pallas_src>
import functools

import jax
import jax.numpy as jnp
from jax.experimental import pallas as pl
from jax.experimental.pallas import tpu as pltpu


_INV_SQRT2 = 0.7071067811865476
_SQRT_2_OVER_PI = 0.7978845608028654


def _ffn_kernel(x_ref, w1_ref, b1_ref, w2_ref, b2_ref, gamma_ref, beta_ref,
                o_ref, *, eps, gelu_approximate):
    """One row-tile of: LayerNorm -> Linear -> GELU -> Linear."""
    x = x_ref[...].astype(jnp.float32)                        # (TM, D)

    # ---- LayerNorm over the feature dim (f32 VPU math on every chip) ----
    mean = jnp.mean(x, axis=-1, keepdims=True)                # (TM, 1)
    centered = x - mean
    var = jnp.mean(centered * centered, axis=-1, keepdims=True)
    xn = centered * jax.lax.rsqrt(var + eps)
    xn = xn * gamma_ref[...] + beta_ref[...]                  # (1, D) broadcasts

    # ---- Linear1 (+bias): full-width MXU matmul, operands in the weight
    # dtype (bf16 by default, already pre-cast in the wrapper), f32 accum ----
    h = jnp.dot(xn.astype(w1_ref.dtype), w1_ref[...],
                preferred_element_type=jnp.float32)           # (TM, H)
    h = h + b1_ref[...]

    # ---- GELU ----
    if gelu_approximate:
        # tanh formulation: transcendental executes in the EUP slot.
        h = 0.5 * h * (1.0 + jnp.tanh(_SQRT_2_OVER_PI * (h + 0.044715 * (h * h * h))))
    else:
        # exact erf (matches torch.nn.GELU() default bit-for-bit, but runs as a
        # long f32 polynomial on the VALU).
        h = 0.5 * h * (1.0 + jax.lax.erf(h * _INV_SQRT2))

    # ---- Linear2 (+bias) ----
    y = jnp.dot(h.astype(w2_ref.dtype), w2_ref[...],
                preferred_element_type=jnp.float32)           # (TM, D)
    y = y + b2_ref[...]

    o_ref[...] = y.astype(o_ref.dtype)


def _vmem_bytes_estimate(row_block, d, hdim, w_bytes):
    """Rough per-kernel VMEM footprint for a given row tile."""
    weights = 2 * 2 * d * hdim * w_bytes            # w1 + w2, double-buffered
    small = 2 * (hdim + 3 * d) * 4                  # b1, b2, gamma, beta
    io = 2 * 2 * row_block * d * 4                  # x / out tiles, double-buffered
    act = row_block * hdim * 4 + 3 * row_block * d * 4   # hidden + LN temporaries
    return weights + small + io + act


def _pick_row_block(m, d, hdim, w_bytes, vmem_budget):
    """Largest sublane-aligned row tile that divides M and fits the VMEM budget.

    Bigger tiles amortize the ~0.35 us per-grid-step overhead and keep the
    256-row MXU passes on v6e/v7x full.  Grid splitting only happens when the
    tile cap forces it (each step then still carries >=256 rows at real sizes).
    """
    for cand in (1024, 768, 512, 384, 256, 128, 64, 32, 16, 8):
        if cand > m or m % cand != 0:
            continue
        if _vmem_bytes_estimate(cand, d, hdim, w_bytes) > vmem_budget:
            continue
        return cand
    # Fallback: single full-extent block (legal; masked sublane access if M%8!=0,
    # which is a perf cliff, not a correctness issue).
    return m


def debfly_feed_forward(x, w1, b1, w2, b2, gamma, beta, *, eps=1e-5,
                        row_block=None, mxu_bf16=True, gelu_approximate=True,
                        vmem_budget_bytes=48 << 20):
    """x: (B, N, D); w1: (D, H); w2: (H, D)  (weights pre-transposed vs nn.Linear)."""
    b, n, d = x.shape
    hdim = w1.shape[1]
    assert w1.shape == (d, hdim) and w2.shape == (hdim, d)
    assert b1.shape == (hdim,) and b2.shape == (d,)
    assert gamma.shape == (d,) and beta.shape == (d,)

    m = b * n
    x2 = x.reshape(m, d)

    # Pre-cast weights in the wrapper: halves weight DMA + VMEM residency and
    # removes the per-grid-step VALU re-cast of the resident weight blocks.
    w_dtype = jnp.bfloat16 if mxu_bf16 else jnp.float32
    w_bytes = 2 if mxu_bf16 else 4
    w1c = w1.astype(w_dtype)
    w2c = w2.astype(w_dtype)

    if row_block is None:
        row_block = _pick_row_block(m, d, hdim, w_bytes, vmem_budget_bytes)
    assert m % row_block == 0
    grid = (m // row_block,)

    kernel = functools.partial(_ffn_kernel, eps=eps,
                               gelu_approximate=gelu_approximate)

    cost = pl.CostEstimate(
        flops=2 * m * (d * hdim + hdim * d),
        transcendentals=m * hdim,                              # one per hidden unit
        bytes_accessed=(4 * 2 * m * d                          # x in + y out (f32)
                        + w_bytes * 2 * d * hdim               # w1 + w2
                        + 4 * (hdim + 3 * d)),                 # biases / gamma / beta
    )

    vmem_limit = min(max(2 * _vmem_bytes_estimate(row_block, d, hdim, w_bytes),
                         32 << 20),
                     64 << 20)                                 # v7x physical cap

    out2 = pl.pallas_call(
        kernel,
        out_shape=jax.ShapeDtypeStruct((m, d), x.dtype),
        grid_spec=pltpu.PrefetchScalarGridSpec(
            num_scalar_prefetch=0,
            grid=grid,
            in_specs=[
                pl.BlockSpec((row_block, d), lambda i: (i, 0)),   # x row tile
                pl.BlockSpec((d, hdim), lambda i: (0, 0)),        # w1 (VMEM-resident)
                pl.BlockSpec((1, hdim), lambda i: (0, 0)),        # b1
                pl.BlockSpec((hdim, d), lambda i: (0, 0)),        # w2 (VMEM-resident)
                pl.BlockSpec((1, d), lambda i: (0, 0)),           # b2
                pl.BlockSpec((1, d), lambda i: (0, 0)),           # gamma
                pl.BlockSpec((1, d), lambda i: (0, 0)),           # beta
            ],
            out_specs=pl.BlockSpec((row_block, d), lambda i: (i, 0)),
        ),
        compiler_params=pltpu.CompilerParams(
            dimension_semantics=("parallel",),      # megacore sharding when grid > 1
            vmem_limit_bytes=vmem_limit),
        cost_estimate=cost,
    )(x2, w1c, b1.reshape(1, hdim), w2c, b2.reshape(1, d),
      gamma.reshape(1, d), beta.reshape(1, d))

    return out2.reshape(b, n, d)


def reference_forward(x, w1, b1, w2, b2, gamma, beta, *, eps=1e-5,
                      mxu_bf16=False, gelu_approximate=False):
    """Pure-JAX reference.  Defaults reproduce the PyTorch module exactly
    (f32 matmuls, erf GELU); flags allow a precision-matched comparison."""
    mean = jnp.mean(x, axis=-1, keepdims=True)
    var = jnp.mean((x - mean) ** 2, axis=-1, keepdims=True)
    xn = (x - mean) * jax.lax.rsqrt(var + eps) * gamma + beta
    op = jnp.bfloat16 if mxu_bf16 else jnp.float32
    hid = jnp.dot(xn.astype(op), w1.astype(op),
                  preferred_element_type=jnp.float32,
                  precision=jax.lax.Precision.HIGHEST) + b1
    if gelu_approximate:
        hid = 0.5 * hid * (1.0 + jnp.tanh(_SQRT_2_OVER_PI * (hid + 0.044715 * hid ** 3)))
    else:
        hid = 0.5 * hid * (1.0 + jax.lax.erf(hid * _INV_SQRT2))
    return jnp.dot(hid.astype(op), w2.astype(op),
                   preferred_element_type=jnp.float32,
                   precision=jax.lax.Precision.HIGHEST) + b2


if __name__ == "__main__":
    # Small, lane-aligned shapes consistent with the module: dim=128, hidden=256.
    B, N, DIM, HIDDEN = 2, 16, 128, 256

    key = jax.random.PRNGKey(0)
    kx, k1, kb1, k2, kb2 = jax.random.split(key, 5)

    x = jax.random.normal(kx, (B, N, DIM), dtype=jnp.float32)
    # Deterministic synthetic parameter init (not a checkpoint load).
    w1 = jax.random.normal(k1, (DIM, HIDDEN), dtype=jnp.float32) * 0.05
    b1 = jax.random.normal(kb1, (HIDDEN,), dtype=jnp.float32) * 0.05
    w2 = jax.random.normal(k2, (HIDDEN, DIM), dtype=jnp.float32) * 0.05
    b2 = jax.random.normal(kb2, (DIM,), dtype=jnp.float32) * 0.05
    gamma = jnp.ones((DIM,), dtype=jnp.float32)   # LayerNorm weight init
    beta = jnp.zeros((DIM,), dtype=jnp.float32)   # LayerNorm bias init

    y = debfly_feed_forward(x, w1, b1, w2, b2, gamma, beta)
    y = jax.block_until_ready(y)
    assert y.shape == (B, N, DIM)

    # Precision-matched reference (bf16 matmul operands, tanh GELU): tight check.
    y_matched = reference_forward(x, w1, b1, w2, b2, gamma, beta,
                                  mxu_bf16=True, gelu_approximate=True)
    assert jnp.allclose(y, y_matched, atol=5e-3, rtol=5e-3), \
        "mismatch vs precision-matched reference"

    # True-module reference (f32 HIGHEST matmuls, exact erf GELU): loose check
    # covering the bf16-operand + tanh-GELU approximation error.
    y_exact = reference_forward(x, w1, b1, w2, b2, gamma, beta)
    assert jnp.allclose(y, y_exact, atol=3e-2, rtol=3e-2), \
        "mismatch vs exact f32 module reference"

    print("KERNEL_OK")
</pallas_src>

<mosaic_0001>
module attributes {stable_mosaic.version = 11 : i64} {
  func.func @_ffn_kernel(%arg0: i32, %arg1: memref<32x128xf32, #tpu.memory_space<vmem>>, %arg2: memref<128x256xbf16, #tpu.memory_space<vmem>>, %arg3: memref<1x256xf32, #tpu.memory_space<vmem>>, %arg4: memref<256x128xbf16, #tpu.memory_space<vmem>>, %arg5: memref<1x128xf32, #tpu.memory_space<vmem>>, %arg6: memref<1x128xf32, #tpu.memory_space<vmem>>, %arg7: memref<1x128xf32, #tpu.memory_space<vmem>>, %arg8: memref<32x128xf32, #tpu.memory_space<vmem>>) attributes {dimension_semantics = [#tpu.dimension_semantics<parallel>], iteration_bounds = array<i64: 1>, scalar_prefetch = 0 : i64, scratch_operands = 0 : i64, tpu.core_type = #tpu.core_type<tc>, window_params = [{transform_indices = @transform_0, window_bounds = array<i64: 32, 128>}, {pipeline_mode = #tpu.pipeline_mode<synchronous>, transform_indices = @transform_1, window_bounds = array<i64: 128, 256>}, {pipeline_mode = #tpu.pipeline_mode<synchronous>, transform_indices = @transform_2, window_bounds = array<i64: 1, 256>}, {pipeline_mode = #tpu.pipeline_mode<synchronous>, transform_indices = @transform_3, window_bounds = array<i64: 256, 128>}, {pipeline_mode = #tpu.pipeline_mode<synchronous>, transform_indices = @transform_4, window_bounds = array<i64: 1, 128>}, {pipeline_mode = #tpu.pipeline_mode<synchronous>, transform_indices = @transform_5, window_bounds = array<i64: 1, 128>}, {pipeline_mode = #tpu.pipeline_mode<synchronous>, transform_indices = @transform_6, window_bounds = array<i64: 1, 128>}, {transform_indices = @transform_7, window_bounds = array<i64: 32, 128>}]} {
    %c0 = arith.constant 0 : index
    %c0_0 = arith.constant 0 : index
    %0 = vector.load %arg1[%c0, %c0_0] : memref<32x128xf32, #tpu.memory_space<vmem>>, vector<32x128xf32>
    %cst = arith.constant dense<0.000000e+00> : vector<32xf32>
    %1 = vector.multi_reduction <add>, %0, %cst [1] : vector<32x128xf32> to vector<32xf32>
    %2 = vector.shape_cast %1 : vector<32xf32> to vector<32x1xf32>
    %cst_1 = arith.constant 1.280000e+02 : f32
    %3 = vector.broadcast %cst_1 : f32 to vector<32x1xf32>
    %4 = arith.divf %2, %3 : vector<32x1xf32>
    %5 = vector.broadcast %4 : vector<32x1xf32> to vector<32x128xf32>
    %6 = arith.subf %0, %5 : vector<32x128xf32>
    %7 = arith.mulf %6, %6 : vector<32x128xf32>
    %cst_2 = arith.constant dense<0.000000e+00> : vector<32xf32>
    %8 = vector.multi_reduction <add>, %7, %cst_2 [1] : vector<32x128xf32> to vector<32xf32>
    %9 = vector.shape_cast %8 : vector<32xf32> to vector<32x1xf32>
    %cst_3 = arith.constant 1.280000e+02 : f32
    %10 = vector.broadcast %cst_3 : f32 to vector<32x1xf32>
    %11 = arith.divf %9, %10 : vector<32x1xf32>
    %cst_4 = arith.constant 9.99999974E-6 : f32
    %12 = vector.broadcast %cst_4 : f32 to vector<32x1xf32>
    %13 = arith.addf %11, %12 : vector<32x1xf32>
    %14 = math.rsqrt %13 : vector<32x1xf32>
    %15 = vector.broadcast %14 : vector<32x1xf32> to vector<32x128xf32>
    %16 = arith.mulf %6, %15 : vector<32x128xf32>
    %c0_5 = arith.constant 0 : index
    %c0_6 = arith.constant 0 : index
    %17 = vector.load %arg6[%c0_5, %c0_6] : memref<1x128xf32, #tpu.memory_space<vmem>>, vector<1x128xf32>
    %18 = vector.broadcast %17 : vector<1x128xf32> to vector<32x128xf32>
    %19 = arith.mulf %16, %18 : vector<32x128xf32>
    %c0_7 = arith.constant 0 : index
    %c0_8 = arith.constant 0 : index
    %20 = vector.load %arg7[%c0_7, %c0_8] : memref<1x128xf32, #tpu.memory_space<vmem>>, vector<1x128xf32>
    %21 = vector.broadcast %20 : vector<1x128xf32> to vector<32x128xf32>
    %22 = arith.addf %19, %21 : vector<32x128xf32>
    %23 = arith.truncf %22 : vector<32x128xf32> to vector<32x128xbf16>
    %c0_9 = arith.constant 0 : index
    %c0_10 = arith.constant 0 : index
    %24 = vector.load %arg2[%c0_9, %c0_10] : memref<128x256xbf16, #tpu.memory_space<vmem>>, vector<128x256xbf16>
    %cst_11 = arith.constant dense<0.000000e+00> : vector<32x256xf32>
    %25 = tpu.matmul %23, %24, %cst_11 {dimension_numbers = #tpu.dot_dimension_numbers<[1], [0], [0], [1], [0, 0, 1, 1], [], []>} : vector<32x128xbf16>, vector<128x256xbf16>, vector<32x256xf32> -> vector<32x256xf32>
    %c0_12 = arith.constant 0 : index
    %c0_13 = arith.constant 0 : index
    %26 = vector.load %arg3[%c0_12, %c0_13] : memref<1x256xf32, #tpu.memory_space<vmem>>, vector<1x256xf32>
    %27 = vector.broadcast %26 : vector<1x256xf32> to vector<32x256xf32>
    %28 = arith.addf %25, %27 : vector<32x256xf32>
    %cst_14 = arith.constant 5.000000e-01 : f32
    %29 = vector.broadcast %cst_14 : f32 to vector<32x256xf32>
    %30 = arith.mulf %29, %28 : vector<32x256xf32>
    %31 = arith.mulf %28, %28 : vector<32x256xf32>
    %32 = arith.mulf %31, %28 : vector<32x256xf32>
    %cst_15 = arith.constant 4.471500e-02 : f32
    %33 = vector.broadcast %cst_15 : f32 to vector<32x256xf32>
    %34 = arith.mulf %33, %32 : vector<32x256xf32>
    %35 = arith.addf %28, %34 : vector<32x256xf32>
    %cst_16 = arith.constant 0.797884583 : f32
    %36 = vector.broadcast %cst_16 : f32 to vector<32x256xf32>
    %37 = arith.mulf %36, %35 : vector<32x256xf32>
    %38 = math.tanh %37 : vector<32x256xf32>
    %cst_17 = arith.constant 1.000000e+00 : f32
    %39 = vector.broadcast %cst_17 : f32 to vector<32x256xf32>
    %40 = arith.addf %39, %38 : vector<32x256xf32>
    %41 = arith.mulf %30, %40 : vector<32x256xf32>
    %42 = arith.truncf %41 : vector<32x256xf32> to vector<32x256xbf16>
    %c0_18 = arith.constant 0 : index
    %c0_19 = arith.constant 0 : index
    %43 = vector.load %arg4[%c0_18, %c0_19] : memref<256x128xbf16, #tpu.memory_space<vmem>>, vector<256x128xbf16>
    %cst_20 = arith.constant dense<0.000000e+00> : vector<32x128xf32>
    %44 = tpu.matmul %42, %43, %cst_20 {dimension_numbers = #tpu.dot_dimension_numbers<[1], [0], [0], [1], [0, 0, 1, 1], [], []>} : vector<32x256xbf16>, vector<256x128xbf16>, vector<32x128xf32> -> vector<32x128xf32>
    %c0_21 = arith.constant 0 : index
    %c0_22 = arith.constant 0 : index
    %45 = vector.load %arg5[%c0_21, %c0_22] : memref<1x128xf32, #tpu.memory_space<vmem>>, vector<1x128xf32>
    %46 = vector.broadcast %45 : vector<1x128xf32> to vector<32x128xf32>
    %47 = arith.addf %44, %46 : vector<32x128xf32>
    %c0_23 = arith.constant 0 : index
    %c0_24 = arith.constant 0 : index
    %48 = vector.load %arg8[%c0_23, %c0_24] : memref<32x128xf32, #tpu.memory_space<vmem>>, vector<32x128xf32>
    tpu.vector_store %arg8[%c0_23, %c0_24], %47 {strides = array<i32>} : memref<32x128xf32, #tpu.memory_space<vmem>>, vector<32x128xf32>,
    return
  }
  func.func @transform_0(%arg0: i32) -> (i32, i32) {
    %c0_i32 = arith.constant 0 : i32
    %c0_i32_0 = arith.constant 0 : i32
    return %arg0, %c0_i32 : i32, i32
  }
  func.func @transform_1(%arg0: i32) -> (i32, i32) {
    %c0_i32 = arith.constant 0 : i32
    %c0_i32_0 = arith.constant 0 : i32
    %c0_i32_1 = arith.constant 0 : i32
    return %c0_i32, %c0_i32_0 : i32, i32
  }
  func.func @transform_2(%arg0: i32) -> (i32, i32) {
    %c0_i32 = arith.constant 0 : i32
    %c0_i32_0 = arith.constant 0 : i32
    %c0_i32_1 = arith.constant 0 : i32
    return %c0_i32, %c0_i32_0 : i32, i32
  }
  func.func @transform_3(%arg0: i32) -> (i32, i32) {
    %c0_i32 = arith.constant 0 : i32
    %c0_i32_0 = arith.constant 0 : i32
    %c0_i32_1 = arith.constant 0 : i32
    return %c0_i32, %c0_i32_0 : i32, i32
  }
  func.func @transform_4(%arg0: i32) -> (i32, i32) {
    %c0_i32 = arith.constant 0 : i32
    %c0_i32_0 = arith.constant 0 : i32
    %c0_i32_1 = arith.constant 0 : i32
    return %c0_i32, %c0_i32_0 : i32, i32
  }
  func.func @transform_5(%arg0: i32) -> (i32, i32) {
    %c0_i32 = arith.constant 0 : i32
    %c0_i32_0 = arith.constant 0 : i32
    %c0_i32_1 = arith.constant 0 : i32
    return %c0_i32, %c0_i32_0 : i32, i32
  }
  func.func @transform_6(%arg0: i32) -> (i32, i32) {
    %c0_i32 = arith.constant 0 : i32
    %c0_i32_0 = arith.constant 0 : i32
    %c0_i32_1 = arith.constant 0 : i32
    return %c0_i32, %c0_i32_0 : i32, i32
  }
  func.func @transform_7(%arg0: i32) -> (i32, i32) {
    %c0_i32 = arith.constant 0 : i32
    %c0_i32_0 = arith.constant 0 : i32
    return %arg0, %c0_i32 : i32, i32
  }
}

</mosaic_0001>

<llo_original>
// kernel: tpu_custom_call.1
$region0: #{tpu_custom_call.1}
  #allocation0 [shape = 'u32[]', space=smem, size = 0x4, offset = 0x4, fixed_abs, tag = 'smem constant byte address 0x4 - core index']
  #allocation1 [shape = 'u32[144,128]{1,0:T(1,128)}', space=vmem, size = 0x12000, scoped, tag = 'internal scratch']
  %s0 = inlined_call_operand.hbm [shape: f32[32,128], index: 0, kind: input, shape index: {}]
  %s1 = inlined_call_operand.hbm [shape: bf16[128,256], index: 1, kind: input, shape index: {}]
  %s2 = inlined_call_operand.vmem [shape: f32[1,256], index: 2, kind: input, shape index: {}]
  %s3 = inlined_call_operand.hbm [shape: bf16[256,128], index: 3, kind: input, shape index: {}]
  %s4 = inlined_call_operand.vmem [shape: f32[1,128], index: 4, kind: input, shape index: {}]
  %s5 = inlined_call_operand.vmem [shape: f32[1,128], index: 5, kind: input, shape index: {}]
  %s6 = inlined_call_operand.vmem [shape: f32[1,128], index: 6, kind: input, shape index: {}]
  %s7 = inlined_call_operand.hbm [shape: f32[32,128], index: 7, kind: output, shape index: {}]
  %s8 = sld [smem:[#allocation0]]
  $region50: #{tpu_custom_call.1} parent=0
    _
  %s10 = ssub.s32 1, %s8
  %s11 = scalar_select 0, %s10, %s8
  $region1: #{tpu_custom_call.1} parent=0
    #allocation2 [shape = 'u8[16384]{0}', space=vmem, size = 0x4000, scoped, tag = 'input window, operand 0, single buffered']
    #allocation3 [shape = 's32[1]{0}', space=sflag, size = 0x4, scoped, tag = 'scoped memory for tpu_custom_call.1']
    #allocation4 [shape = 's32[1]{0}', space=sflag, size = 0x4, scoped, tag = 'scoped memory for tpu_custom_call.1']
    #allocation5 [shape = 'u8[65536]{0}', space=vmem, size = 0x10000, scoped, tag = 'input window, operand 1, single buffered']
    #allocation6 [shape = 's32[1]{0}', space=sflag, size = 0x4, scoped, tag = 'scoped memory for tpu_custom_call.1']
    #allocation7 [shape = 'u8[65536]{0}', space=vmem, size = 0x10000, scoped, tag = 'input window, operand 3, single buffered']
    #allocation8 [shape = 'u8[16384]{0}', space=vmem, size = 0x4000, scoped, tag = 'output window, operand 0, single buffered']
    %12 = vsyncpa [#allocation3], 0
    %13 = vsyncpa [#allocation6], 0
    %14 = vsyncpa [#allocation4], 0
    // Predicated region
    $region2: #{tpu_custom_call.1} parent=1 // pred_check
      _
    $region3: #{tpu_custom_call.1} parent=1 // pred_check_branch
      %16 = sbr.rel (0) target = $region5
    $region4: #{tpu_custom_call.1} parent=1 // pred_region
      %s18 = ssub.s32 512, 512
      %19 = vsyncadd [#allocation3], %s18
      %s20 = sshll.u32 [#allocation2], 4
      %s21 = int_to_ptr.vmem [resolvable:$true] %s20
      %26 = dma.hbm_to_vmem [thread:$0]  %s0, 512, %s21, [#allocation3], 128, 128, 8
    $region5: #{tpu_custom_call.1} parent=1 // pred_fallthru
      _
    // Predicated region
    $region6: #{tpu_custom_call.1} parent=1 // pred_check
      _
    $region7: #{tpu_custom_call.1} parent=1 // pred_check_branch
      %28 = sbr.rel (0) target = $region9
    $region8: #{tpu_custom_call.1} parent=1 // pred_region
      %s30 = ssub.s32 2048, 2048
      %31 = vsyncadd [#allocation6], %s30
      %s32 = sshll.u32 [#allocation5], 4
      %s33 = int_to_ptr.vmem [resolvable:$true] %s32
      %38 = dma.hbm_to_vmem [thread:$0]  %s1, 2048, %s33, [#allocation6], 128, 128, 8
    $region9: #{tpu_custom_call.1} parent=1 // pred_fallthru
      _
    // Predicated region
    $region10: #{tpu_custom_call.1} parent=1 // pred_check
      _
    $region11: #{tpu_custom_call.1} parent=1 // pred_check_branch
      %40 = sbr.rel (0) target = $region13
    $region12: #{tpu_custom_call.1} parent=1 // pred_region
      _
    $region13: #{tpu_custom_call.1} parent=1 // pred_fallthru
      _
    // Predicated region
    $region14: #{tpu_custom_call.1} parent=1 // pred_check
      _
    $region15: #{tpu_custom_call.1} parent=1 // pred_check_branch
      %42 = sbr.rel (0) target = $region17
    $region16: #{tpu_custom_call.1} parent=1 // pred_region
      %s44 = ssub.s32 2048, 2048
      %45 = vsyncadd [#allocation6], %s44
      %s46 = sshll.u32 [#allocation7], 4
      %s47 = int_to_ptr.vmem [resolvable:$true] %s46
      %52 = dma.hbm_to_vmem [thread:$0]  %s3, 2048, %s47, [#allocation6], 64, 64, 4
    $region17: #{tpu_custom_call.1} parent=1 // pred_fallthru
      _
    // Predicated region
    $region18: #{tpu_custom_call.1} parent=1 // pred_check
      _
    $region19: #{tpu_custom_call.1} parent=1 // pred_check_branch
      %54 = sbr.rel (0) target = $region21
    $region20: #{tpu_custom_call.1} parent=1 // pred_region
      _
    $region21: #{tpu_custom_call.1} parent=1 // pred_fallthru
      _
    // Predicated region
    $region22: #{tpu_custom_call.1} parent=1 // pred_check
      _
    $region23: #{tpu_custom_call.1} parent=1 // pred_check_branch
      %56 = sbr.rel (0) target = $region25
    $region24: #{tpu_custom_call.1} parent=1 // pred_region
      _
    $region25: #{tpu_custom_call.1} parent=1 // pred_fallthru
      _
    // Predicated region
    $region26: #{tpu_custom_call.1} parent=1 // pred_check
      _
    $region27: #{tpu_custom_call.1} parent=1 // pred_check_branch
      %58 = sbr.rel (0) target = $region29
    $region28: #{tpu_custom_call.1} parent=1 // pred_region
      _
    $region29: #{tpu_custom_call.1} parent=1 // pred_fallthru
      _
    // Predicated region
    $region30: #{tpu_custom_call.1} parent=1 // pred_check
      _
    $region31: #{tpu_custom_call.1} parent=1 // pred_check_branch
      %60 = sbr.rel (0) target = $region33
    $region32: #{tpu_custom_call.1} parent=1 // pred_region
      %61 = dma.done [#allocation3], 512
    $region33: #{tpu_custom_call.1} parent=1 // pred_fallthru
      _
    // Predicated region
    $region34: #{tpu_custom_call.1} parent=1 // pred_check
      _
    $region35: #{tpu_custom_call.1} parent=1 // pred_check_branch
      %63 = sbr.rel (0) target = $region37
    $region36: #{tpu_custom_call.1} parent=1 // pred_region
      %64 = dma.done [#allocation6], 2048
    $region37: #{tpu_custom_call.1} parent=1 // pred_fallthru
      _
    // Predicated region
    $region38: #{tpu_custom_call.1} parent=1 // pred_check
      _
    $region39: #{tpu_custom_call.1} parent=1 // pred_check_branch
      %66 = sbr.rel (0) target = $region41
    $region40: #{tpu_custom_call.1} parent=1 // pred_region
      %67 = dma.done [#allocation6], 2048
    $region41: #{tpu_custom_call.1} parent=1 // pred_fallthru
      _
    %v69 = vld [vmem:[#allocation2] sm:$0xff]
    %v70 = vld [vmem:[#allocation2 + $0x8] sm:$0xff]
    %v71 = vld [vmem:[#allocation2 + $0x10] sm:$0xff]
    %v72 = vld [vmem:[#allocation2 + $0x18] sm:$0xff]
    %73 = vadd.xlane.f32.xlu0 %v69
    %v74 = vpop.xlane.xlu0 %73
    %75 = vadd.xlane.f32.xlu0 %v70
    %v76 = vpop.xlane.xlu0 %75
    %77 = vadd.xlane.f32.xlu0 %v71
    %v78 = vpop.xlane.xlu0 %77
    %79 = vadd.xlane.f32.xlu0 %v72
    %v80 = vpop.xlane.xlu0 %79
    %v81 = vrcp.pop 128.0
    %v82 = vmul.f32 %v74, %v81
    %v83 = vmul.f32 %v76, %v81
    %v84 = vmul.f32 %v78, %v81
    %v85 = vmul.f32 %v80, %v81
    %v86 = vsub.f32 %v69, %v82
    %v87 = vsub.f32 %v70, %v83
    %v88 = vsub.f32 %v71, %v84
    %v89 = vsub.f32 %v72, %v85
    %v90 = vmul.f32 %v86, %v86
    %v91 = vmul.f32 %v87, %v87
    %v92 = vmul.f32 %v88, %v88
    %v93 = vmul.f32 %v89, %v89
    %94 = vadd.xlane.f32.xlu0 %v90
    %v95 = vpop.xlane.xlu0 %94
    %96 = vadd.xlane.f32.xlu0 %v91
    %v97 = vpop.xlane.xlu0 %96
    %98 = vadd.xlane.f32.xlu0 %v92
    %v99 = vpop.xlane.xlu0 %98
    %100 = vadd.xlane.f32.xlu0 %v93
    %v101 = vpop.xlane.xlu0 %100
    %v102 = vmul.f32 %v95, %v81
    %v103 = vmul.f32 %v97, %v81
    %v104 = vmul.f32 %v99, %v81
    %v105 = vmul.f32 %v101, %v81
    %v106 = vadd.f32 %v102, 1e-05
    %v107 = vadd.f32 %v103, 1e-05
    %v108 = vadd.f32 %v104, 1e-05
    %v109 = vadd.f32 %v105, 1e-05
    %v110 = vrsqrt.pop %v106
    %v111 = vrsqrt.pop %v107
    %v112 = vrsqrt.pop %v108
    %v113 = vrsqrt.pop %v109
    %v114 = vmul.f32 %v86, %v110
    %v115 = vmul.f32 %v87, %v111
    %v116 = vmul.f32 %v88, %v112
    %v117 = vmul.f32 %v89, %v113
    %v118 = vld [vmem:[%s5] sm:$0x1]
    %v120 = vlaneseq
    %v121 = vshrl.u32 %v120, 7
    %v122 = vsub.s32 0, %v121
    %v123 = vrot.slane %v118, %v122
    %v125 = vmul.f32 %v114, %v123
    %v126 = vmul.f32 %v115, %v123
    %v127 = vmul.f32 %v116, %v123
    %v128 = vmul.f32 %v117, %v123
    %v129 = vld [vmem:[%s6] sm:$0x1]
    %v131 = vlaneseq
    %v132 = vshrl.u32 %v131, 7
    %v133 = vsub.s32 0, %v132
    %v134 = vrot.slane %v129, %v133
    %v136 = vadd.f32 %v125, %v134
    %v137 = vadd.f32 %v126, %v134
    %v138 = vadd.f32 %v127, %v134
    %v139 = vadd.f32 %v128, %v134
    %v140 = vpack.c.bf16 %v137, %v136
    %v141 = vpack.c.bf16 %v139, %v138
    %v142 = vld [vmem:[#allocation5] sm:$0xff]
    %v143 = vld [vmem:[#allocation5 + $0x8] sm:$0xff]
    %v144 = vld [vmem:[#allocation5 + $0x10] sm:$0xff]
    %v145 = vld [vmem:[#allocation5 + $0x18] sm:$0xff]
    %v146 = vld [vmem:[#allocation5 + $0x20] sm:$0xff]
    %v147 = vld [vmem:[#allocation5 + $0x28] sm:$0xff]
    %v148 = vld [vmem:[#allocation5 + $0x30] sm:$0xff]
    %v149 = vld [vmem:[#allocation5 + $0x38] sm:$0xff]
    %v150 = vld [vmem:[#allocation5 + $0x40] sm:$0xff]
    %v151 = vld [vmem:[#allocation5 + $0x48] sm:$0xff]
    %v152 = vld [vmem:[#allocation5 + $0x50] sm:$0xff]
    %v153 = vld [vmem:[#allocation5 + $0x58] sm:$0xff]
    %v154 = vld [vmem:[#allocation5 + $0x60] sm:$0xff]
    %v155 = vld [vmem:[#allocation5 + $0x68] sm:$0xff]
    %v156 = vld [vmem:[#allocation5 + $0x70] sm:$0xff]
    %v157 = vld [vmem:[#allocation5 + $0x78] sm:$0xff]
    %v158 = vld [vmem:[%s2] sm:$0x3]
    %v160 = vlaneseq
    %v161 = vshrl.u32 %v160, 7
    %v162 = vsub.s32 0, %v161
    %v163 = vrot.slane %v158, %v162
    %v164 = vlaneseq
    %v165 = vshrl.u32 %v164, 7
    %v166 = vsub.s32 1, %v165
    %v167 = vrot.slane %v158, %v166
    %v186 = vunpack.c.l.b16 %v142
    %v187 = vunpack.c.h.b16 %v142
    %v188 = vunpack.c.l.b16 %v143
    %v189 = vunpack.c.h.b16 %v143
    %v190 = vunpack.c.l.b16 %v144
    %v191 = vunpack.c.h.b16 %v144
    %v192 = vunpack.c.l.b16 %v145
    %v193 = vunpack.c.h.b16 %v145
    %v194 = vunpack.c.l.b16 %v146
    %v195 = vunpack.c.h.b16 %v146
    %v196 = vunpack.c.l.b16 %v147
    %v197 = vunpack.c.h.b16 %v147
    %v198 = vunpack.c.l.b16 %v148
    %v199 = vunpack.c.h.b16 %v148
    %v200 = vunpack.c.l.b16 %v149
    %v201 = vunpack.c.h.b16 %v149
    %v202 = vunpack.c.l.b16 %v150
    %v203 = vunpack.c.h.b16 %v150
    %v204 = vunpack.c.l.b16 %v151
    %v205 = vunpack.c.h.b16 %v151
    %v206 = vunpack.c.l.b16 %v152
    %v207 = vunpack.c.h.b16 %v152
    %v208 = vunpack.c.l.b16 %v153
    %v209 = vunpack.c.h.b16 %v153
    %v210 = vunpack.c.l.b16 %v154
    %v211 = vunpack.c.h.b16 %v154
    %v212 = vunpack.c.l.b16 %v155
    %v213 = vunpack.c.h.b16 %v155
    %v214 = vunpack.c.l.b16 %v156
    %v215 = vunpack.c.h.b16 %v156
    %v216 = vunpack.c.l.b16 %v157
    %v217 = vunpack.c.h.b16 %v157
    %v218 = vpack.c.b16 %v188, %v186
    %v219 = vpack.c.b16 %v189, %v187
    %v220 = vpack.c.b16 %v192, %v190
    %v221 = vpack.c.b16 %v193, %v191
    %v222 = vpack.c.b16 %v196, %v194
    %v223 = vpack.c.b16 %v197, %v195
    %v224 = vpack.c.b16 %v200, %v198
    %v225 = vpack.c.b16 %v201, %v199
    %v226 = vpack.c.b16 %v204, %v202
    %v227 = vpack.c.b16 %v205, %v203
    %v228 = vpack.c.b16 %v208, %v206
    %v229 = vpack.c.b16 %v209, %v207
    %v230 = vpack.c.b16 %v212, %v210
    %v231 = vpack.c.b16 %v213, %v211
    %v232 = vpack.c.b16 %v216, %v214
    %v233 = vpack.c.b16 %v217, %v215
    %250 = vmatprep.subr.bf16.mxu0 %v219
    %251 = vmatpush1.bf16.msra.mxu0 %v218
    %252 = vmatprep.subr.bf16.mxu0 %v221
    %253 = vmatpush1.bf16.msra.mxu0 %v220
    %254 = vmatprep.subr.bf16.mxu0 %v223
    %255 = vmatpush1.bf16.msra.mxu0 %v222
    %256 = vmatprep.subr.bf16.mxu0 %v225
    %257 = vmatpush1.bf16.msra.mxu0 %v224
    %258 = vmatprep.subr.bf16.mxu0 %v227
    %259 = vmatpush1.bf16.msra.mxu0 %v226
    %260 = vmatprep.subr.bf16.mxu0 %v229
    %261 = vmatpush1.bf16.msra.mxu0 %v228
    %262 = vmatprep.subr.bf16.mxu0 %v231
    %263 = vmatpush1.bf16.msra.mxu0 %v230
    %264 = vmatprep.subr.bf16.mxu0 %v233
    %265 = vmatpush1.bf16.msra.mxu0 %v232
    %266 = vmatprep.subr.bf16.mxu0 0
    %267 = vmatpush1.bf16.msra.mxu0 0
    %268 = vmatprep.subr.bf16.mxu0 0
    %269 = vmatpush1.bf16.msra.mxu0 0
    %270 = vmatprep.subr.bf16.mxu0 0
    %271 = vmatpush1.bf16.msra.mxu0 0
    %272 = vmatprep.subr.bf16.mxu0 0
    %273 = vmatpush1.bf16.msra.mxu0 0
    %274 = vmatprep.subr.bf16.mxu0 0
    %275 = vmatpush1.bf16.msra.mxu0 0
    %276 = vmatprep.subr.bf16.mxu0 0
    %277 = vmatpush1.bf16.msra.mxu0 0
    %278 = vmatprep.subr.bf16.mxu0 0
    %279 = vmatpush1.bf16.msra.mxu0 0
    %280 = vmatprep.subr.bf16.mxu0 0
    %281 = vmatpush1.bf16.msra.mxu0 0
    %282 = vmatprep.mubr.bf16.mxu0 0
    %283 = vmatmul.mubr.bf16.gmra.mrb[0].mxu0 %v140
    %v284 = vpop.f32.mrb[0].mxu0
    %v285 = vadd.f32 %v163, %v284
    %v286 = vpop.f32.mrb[0].mxu0
    %v287 = vadd.f32 %v167, %v286
    %v288 = vpop.f32.mrb[0].mxu0
    %v289 = vadd.f32 %v163, %v288
    %v290 = vpop.f32.mrb[0].mxu0
    %v291 = vadd.f32 %v167, %v290
    %292 = vmatprep.mubr.bf16.mxu0 0
    %293 = vmatmul.mubr.bf16.gmra.mrb[0].mxu0 %v141
    %v294 = vpop.f32.mrb[0].mxu0
    %v295 = vadd.f32 %v163, %v294
    %v296 = vpop.f32.mrb[0].mxu0
    %v297 = vadd.f32 %v167, %v296
    %v298 = vpop.f32.mrb[0].mxu0
    %v299 = vadd.f32 %v163, %v298
    %v300 = vpop.f32.mrb[0].mxu0
    %v301 = vadd.f32 %v167, %v300
    %302 = vdwg.mxu0
    %v303 = vmul.f32 %v285, 0.5
    %v304 = vmul.f32 %v287, 0.5
    %v305 = vmul.f32 %v289, 0.5
    %v306 = vmul.f32 %v291, 0.5
    %v307 = vmul.f32 %v295, 0.5
    %v308 = vmul.f32 %v297, 0.5
    %v309 = vmul.f32 %v299, 0.5
    %v310 = vmul.f32 %v301, 0.5
    %v311 = vmul.f32 %v285, %v285
    %v312 = vmul.f32 %v287, %v287
    %v313 = vmul.f32 %v289, %v289
    %v314 = vmul.f32 %v291, %v291
    %v315 = vmul.f32 %v295, %v295
    %v316 = vmul.f32 %v297, %v297
    %v317 = vmul.f32 %v299, %v299
    %v318 = vmul.f32 %v301, %v301
    %v319 = vmul.f32 %v311, %v285
    %v320 = vmul.f32 %v312, %v287
    %v321 = vmul.f32 %v313, %v289
    %v322 = vmul.f32 %v314, %v291
    %v323 = vmul.f32 %v315, %v295
    %v324 = vmul.f32 %v316, %v297
    %v325 = vmul.f32 %v317, %v299
    %v326 = vmul.f32 %v318, %v301
    %v327 = vmul.f32 %v319, 0.044715
    %v328 = vmul.f32 %v320, 0.044715
    %v329 = vmul.f32 %v321, 0.044715
    %v330 = vmul.f32 %v322, 0.044715
    %v331 = vmul.f32 %v323, 0.044715
    %v332 = vmul.f32 %v324, 0.044715
    %v333 = vmul.f32 %v325, 0.044715
    %v334 = vmul.f32 %v326, 0.044715
    %v335 = vadd.f32 %v285, %v327
    %v336 = vadd.f32 %v287, %v328
    %v337 = vadd.f32 %v289, %v329
    %v338 = vadd.f32 %v291, %v330
    %v339 = vadd.f32 %v295, %v331
    %v340 = vadd.f32 %v297, %v332
    %v341 = vadd.f32 %v299, %v333
    %v342 = vadd.f32 %v301, %v334
    %v343 = vmul.f32 %v335, 0.7978846
    %v344 = vmul.f32 %v336, 0.7978846
    %v345 = vmul.f32 %v337, 0.7978846
    %v346 = vmul.f32 %v338, 0.7978846
    %v347 = vmul.f32 %v339, 0.7978846
    %v348 = vmul.f32 %v340, 0.7978846
    %v349 = vmul.f32 %v341, 0.7978846
    %v350 = vmul.f32 %v342, 0.7978846
    %v351 = vtanh.pop %v343
    %v352 = vtanh.pop %v344
    %v353 = vtanh.pop %v345
    %v354 = vtanh.pop %v346
    %v355 = vtanh.pop %v347
    %v356 = vtanh.pop %v348
    %v357 = vtanh.pop %v349
    %v358 = vtanh.pop %v350
    %v359 = vadd.f32 %v351, 1.0
    %v360 = vadd.f32 %v352, 1.0
    %v361 = vadd.f32 %v353, 1.0
    %v362 = vadd.f32 %v354, 1.0
    %v363 = vadd.f32 %v355, 1.0
    %v364 = vadd.f32 %v356, 1.0
    %v365 = vadd.f32 %v357, 1.0
    %v366 = vadd.f32 %v358, 1.0
    %v367 = vmul.f32 %v303, %v359
    %v368 = vmul.f32 %v304, %v360
    %v369 = vmul.f32 %v305, %v361
    %v370 = vmul.f32 %v306, %v362
    %v371 = vmul.f32 %v307, %v363
    %v372 = vmul.f32 %v308, %v364
    %v373 = vmul.f32 %v309, %v365
    %v374 = vmul.f32 %v310, %v366
    %v375 = vpack.c.bf16 %v369, %v367
    %v376 = vpack.c.bf16 %v370, %v368
    %v377 = vpack.c.bf16 %v373, %v371
    %v378 = vpack.c.bf16 %v374, %v372
    %v379 = vld [vmem:[#allocation7] sm:$0xf]
    %v380 = vld [vmem:[#allocation7 + $0x4] sm:$0xf]
    %v381 = vld [vmem:[#allocation7 + $0x8] sm:$0xf]
    %v382 = vld [vmem:[#allocation7 + $0xc] sm:$0xf]
    %v383 = vld [vmem:[#allocation7 + $0x10] sm:$0xf]
    %v384 = vld [vmem:[#allocation7 + $0x14] sm:$0xf]
    %v385 = vld [vmem:[#allocation7 + $0x18] sm:$0xf]
    %v386 = vld [vmem:[#allocation7 + $0x1c] sm:$0xf]
    %v387 = vld [vmem:[#allocation7 + $0x20] sm:$0xf]
    %v388 = vld [vmem:[#allocation7 + $0x24] sm:$0xf]
    %v389 = vld [vmem:[#allocation7 + $0x28] sm:$0xf]
    %v390 = vld [vmem:[#allocation7 + $0x2c] sm:$0xf]
    %v391 = vld [vmem:[#allocation7 + $0x30] sm:$0xf]
    %v392 = vld [vmem:[#allocation7 + $0x34] sm:$0xf]
    %v393 = vld [vmem:[#allocation7 + $0x38] sm:$0xf]
    %v394 = vld [vmem:[#allocation7 + $0x3c] sm:$0xf]
    %v395 = vld [vmem:[#allocation7 + $0x40] sm:$0xf]
    %v396 = vld [vmem:[#allocation7 + $0x44] sm:$0xf]
    %v397 = vld [vmem:[#allocation7 + $0x48] sm:$0xf]
    %v398 = vld [vmem:[#allocation7 + $0x4c] sm:$0xf]
    %v399 = vld [vmem:[#allocation7 + $0x50] sm:$0xf]
    %v400 = vld [vmem:[#allocation7 + $0x54] sm:$0xf]
    %v401 = vld [vmem:[#allocation7 + $0x58] sm:$0xf]
    %v402 = vld [vmem:[#allocation7 + $0x5c] sm:$0xf]
    %v403 = vld [vmem:[#allocation7 + $0x60] sm:$0xf]
    %v404 = vld [vmem:[#allocation7 + $0x64] sm:$0xf]
    %v405 = vld [vmem:[#allocation7 + $0x68] sm:$0xf]
    %v406 = vld [vmem:[#allocation7 + $0x6c] sm:$0xf]
    %v407 = vld [vmem:[#allocation7 + $0x70] sm:$0xf]
    %v408 = vld [vmem:[#allocation7 + $0x74] sm:$0xf]
    %v409 = vld [vmem:[#allocation7 + $0x78] sm:$0xf]
    %v410 = vld [vmem:[#allocation7 + $0x7c] sm:$0xf]
    %v411 = vld [vmem:[%s4] sm:$0x1]
    %v413 = vlaneseq
    %v414 = vshrl.u32 %v413, 7
    %v415 = vsub.s32 0, %v414
    %v416 = vrot.slane %v411, %v415
    %v450 = vunpack.c.l.b16 %v379
    %v451 = vunpack.c.l.b16 %v380
    %v452 = vunpack.c.l.b16 %v381
    %v453 = vunpack.c.l.b16 %v382
    %v454 = vunpack.c.l.b16 %v383
    %v455 = vunpack.c.l.b16 %v384
    %v456 = vunpack.c.l.b16 %v385
    %v457 = vunpack.c.l.b16 %v386
    %v458 = vunpack.c.l.b16 %v387
    %v459 = vunpack.c.l.b16 %v388
    %v460 = vunpack.c.l.b16 %v389
    %v461 = vunpack.c.l.b16 %v390
    %v462 = vunpack.c.l.b16 %v391
    %v463 = vunpack.c.l.b16 %v392
    %v464 = vunpack.c.l.b16 %v393
    %v465 = vunpack.c.l.b16 %v394
    %v466 = vunpack.c.l.b16 %v395
    %v467 = vunpack.c.l.b16 %v396
    %v468 = vunpack.c.l.b16 %v397
    %v469 = vunpack.c.l.b16 %v398
    %v470 = vunpack.c.l.b16 %v399
    %v471 = vunpack.c.l.b16 %v400
    %v472 = vunpack.c.l.b16 %v401
    %v473 = vunpack.c.l.b16 %v402
    %v474 = vunpack.c.l.b16 %v403
    %v475 = vunpack.c.l.b16 %v404
    %v476 = vunpack.c.l.b16 %v405
    %v477 = vunpack.c.l.b16 %v406
    %v478 = vunpack.c.l.b16 %v407
    %v479 = vunpack.c.l.b16 %v408
    %v480 = vunpack.c.l.b16 %v409
    %v481 = vunpack.c.l.b16 %v410
    %v482 = vpack.c.b16 %v451, %v450
    %v483 = vpack.c.b16 %v453, %v452
    %v484 = vpack.c.b16 %v455, %v454
    %v485 = vpack.c.b16 %v457, %v456
    %v486 = vpack.c.b16 %v459, %v458
    %v487 = vpack.c.b16 %v461, %v460
    %v488 = vpack.c.b16 %v463, %v462
    %v489 = vpack.c.b16 %v465, %v464
    %v490 = vpack.c.b16 %v467, %v466
    %v491 = vpack.c.b16 %v469, %v468
    %v492 = vpack.c.b16 %v471, %v470
    %v493 = vpack.c.b16 %v473, %v472
    %v494 = vpack.c.b16 %v475, %v474
    %v495 = vpack.c.b16 %v477, %v476
    %v496 = vpack.c.b16 %v479, %v478
    %v497 = vpack.c.b16 %v481, %v480
    %514 = vmatprep.subr.bf16.mxu0 0
    %515 = vmatpush1.bf16.msra.mxu0 %v482
    %516 = vmatprep.subr.bf16.mxu0 0
    %517 = vmatpush1.bf16.msra.mxu0 %v483
    %518 = vmatprep.subr.bf16.mxu0 0
    %519 = vmatpush1.bf16.msra.mxu0 %v484
    %520 = vmatprep.subr.bf16.mxu0 0
    %521 = vmatpush1.bf16.msra.mxu0 %v485
    %522 = vmatprep.subr.bf16.mxu0 0
    %523 = vmatpush1.bf16.msra.mxu0 %v486
    %524 = vmatprep.subr.bf16.mxu0 0
    %525 = vmatpush1.bf16.msra.mxu0 %v487
    %526 = vmatprep.subr.bf16.mxu0 0
    %527 = vmatpush1.bf16.msra.mxu0 %v488
    %528 = vmatprep.subr.bf16.mxu0 0
    %529 = vmatpush1.bf16.msra.mxu0 %v489
    %530 = vmatprep.subr.bf16.mxu0 0
    %531 = vmatpush1.bf16.msra.mxu0 %v490
    %532 = vmatprep.subr.bf16.mxu0 0
    %533 = vmatpush1.bf16.msra.mxu0 %v491
    %534 = vmatprep.subr.bf16.mxu0 0
    %535 = vmatpush1.bf16.msra.mxu0 %v492
    %536 = vmatprep.subr.bf16.mxu0 0
    %537 = vmatpush1.bf16.msra.mxu0 %v493
    %538 = vmatprep.subr.bf16.mxu0 0
    %539 = vmatpush1.bf16.msra.mxu0 %v494
    %540 = vmatprep.subr.bf16.mxu0 0
    %541 = vmatpush1.bf16.msra.mxu0 %v495
    %542 = vmatprep.subr.bf16.mxu0 0
    %543 = vmatpush1.bf16.msra.mxu0 %v496
    %544 = vmatprep.subr.bf16.mxu0 0
    %545 = vmatpush1.bf16.msra.mxu0 %v497
    %546 = vmatprep.mubr.bf16.mxu0 %v376
    %547 = vmatmul.mubr.bf16.gmra.mrb[0].mxu0 %v375
    %v548 = vpop.f32.mrb[0].mxu0
    %v549 = vadd.f32 %v416, %v548
    %v550 = vpop.f32.mrb[0].mxu0
    %v551 = vpop.f32.mrb[0].mxu0
    %v552 = vadd.f32 %v416, %v551
    %v553 = vpop.f32.mrb[0].mxu0
    %554 = vmatprep.mubr.bf16.mxu0 %v378
    %555 = vmatmul.mubr.bf16.gmra.mrb[0].mxu0 %v377
    %v556 = vpop.f32.mrb[0].mxu0
    %v557 = vadd.f32 %v416, %v556
    %v558 = vpop.f32.mrb[0].mxu0
    %v559 = vpop.f32.mrb[0].mxu0
    %v560 = vadd.f32 %v416, %v559
    %v561 = vpop.f32.mrb[0].mxu0
    %562 = vdwg.mxu0
    %563 = vst [vmem:[#allocation8] sm:$0xff] %v549
    %564 = vst [vmem:[#allocation8 + $0x8] sm:$0xff] %v552
    %565 = vst [vmem:[#allocation8 + $0x10] sm:$0xff] %v557
    %566 = vst [vmem:[#allocation8 + $0x18] sm:$0xff] %v560
    // Predicated region
    $region42: #{tpu_custom_call.1} parent=1 // pred_check
      _
    $region43: #{tpu_custom_call.1} parent=1 // pred_check_branch
      %568 = sbr.rel (0) target = $region45
    $region44: #{tpu_custom_call.1} parent=1 // pred_region
      %s570 = ssub.s32 512, 512
      %571 = vsyncadd [#allocation4], %s570
      %s572 = sshll.u32 [#allocation8], 4
      %s573 = int_to_ptr.vmem [resolvable:$true] %s572
      %578 = dma.vmem_to_hbm [thread:$0]  %s573, 512, %s7, [#allocation4], 128, 128, 8
    $region45: #{tpu_custom_call.1} parent=1 // pred_fallthru
      _
    // Predicated region
    $region46: #{tpu_custom_call.1} parent=1 // pred_check
      _
    $region47: #{tpu_custom_call.1} parent=1 // pred_check_branch
      %580 = sbr.rel (0) target = $region49
    $region48: #{tpu_custom_call.1} parent=1 // pred_region
      %581 = dma.done [#allocation4], 512
    $region49: #{tpu_custom_call.1} parent=1 // pred_fallthru
      _
    %582 = vsyncpa [#allocation3], 1
    %583 = vsyncpa [#allocation6], 1
    %584 = vsyncpa [#allocation4], 1

</llo_original>
